<compile_context>
chip_gen: v7x
topology: tpu7x:2x2x1
jax: 0.10.0
libtpu: 0.0.40
codegen_flags: <defaults>
</compile_context>

<pallas_src>
import jax
import jax.numpy as jnp
from jax.experimental import pallas as pl
from jax.experimental.pallas import tpu as pltpu

LANE = 128
SUBLANE = 8


def _round_up(x, m):
    return (x + m - 1) // m * m


def prepare_params(conv_weight, conv_bias, lane_pad=LANE):
    """One-time prep: torch Conv1d params (out, in, 3) -> fused im2col layout.

    Returns:
      w2d: (3*Cin, Cout_pad) with w2d[k*Cin + c, o] = conv_weight[o, c, k]
      b2d: (1, Cout_pad)
    """
    c_out, c_in, k = conv_weight.shape
    assert k == 3, "VideoEncoder uses kernel_size=3"
    c_out_p = _round_up(c_out, lane_pad)
    w2d = jnp.transpose(conv_weight, (2, 1, 0)).reshape(k * c_in, c_out)
    w2d = jnp.pad(w2d.astype(jnp.float32), ((0, 0), (0, c_out_p - c_out)))
    b2d = jnp.pad(conv_bias.astype(jnp.float32).reshape(1, c_out),
                  ((0, 0), (0, c_out_p - c_out)))
    return w2d, b2d


def video_encoder_kernel(xc_ref, xn_ref, w_ref, b_ref, o_ref):
    # xc_ref: (TT, Cin)  current tile of the zero-padded input
    # xn_ref: (TT, Cin)  next tile (only its first 2 halo rows are used)
    # w_ref : (3*Cin, Cout_pad)   b_ref: (1, Cout_pad)   o_ref: (TT, Cout_pad)
    tt = xc_ref.shape[0]
    x_full = jnp.concatenate([xc_ref[...], xn_ref[0:2, :]], axis=0)  # (TT+2, Cin)

    # Fused im2col: one matmul with contraction dim 3*Cin instead of 3 tap matmuls.
    xcat = jnp.concatenate(
        [x_full[0:tt, :], x_full[1:tt + 1, :], x_full[2:tt + 2, :]], axis=1)  # (TT, 3*Cin)

    y = jnp.dot(xcat, w_ref[...], preferred_element_type=jnp.float32) + b_ref[...]

    # TODO(synk): Dropout is identity in eval mode; training-mode dropout would use
    # pltpu.prng_seed + pltpu.stateful_bernoulli (torch RNG stream is not reproducible).
    o_ref[...] = jnp.maximum(y, 0.0).astype(o_ref.dtype)


def video_encoder(video, w2d, b2d, out_dim, tile_t=None):
    """video: (T, in_dim); w2d/b2d from prepare_params(); returns (T, out_dim)."""
    T, c_in = video.shape
    _, c_out_p = w2d.shape

    if tile_t is None:
        # Large tiles amortize the ~0.35us/step overhead; cap well under VMEM limits.
        tile_t = min(1024, _round_up(T, SUBLANE))
    tile_t = _round_up(tile_t, SUBLANE)
    num_tiles = pl.cdiv(T, tile_t)

    # Zero-pad the time axis: 1 leading zero row (left conv pad) plus enough trailing
    # zeros so block (i+1) always exists for the halo read of the last tile.
    t_total = (num_tiles + 1) * tile_t
    x_pad = jnp.zeros((t_total, c_in), dtype=video.dtype).at[1:T + 1].set(video)

    out = pl.pallas_call(
        video_encoder_kernel,
        out_shape=jax.ShapeDtypeStruct((num_tiles * tile_t, c_out_p), video.dtype),
        grid=(num_tiles,),
        in_specs=[
            pl.BlockSpec((tile_t, c_in), lambda i: (i, 0)),      # current tile
            pl.BlockSpec((tile_t, c_in), lambda i: (i + 1, 0)),  # next tile (halo rows)
            pl.BlockSpec(memory_space=pltpu.MemorySpace.VMEM),   # fused im2col weights
            pl.BlockSpec(memory_space=pltpu.MemorySpace.VMEM),   # bias
        ],
        out_specs=pl.BlockSpec((tile_t, c_out_p), lambda i: (i, 0)),
        compiler_params=pltpu.CompilerParams(
            dimension_semantics=("parallel",),
            vmem_limit_bytes=32 * 1024 * 1024,
        ),
    )(x_pad, x_pad, w2d, b2d)

    return out[:T, :out_dim]


def reference(video, conv_weight, conv_bias):
    # Pure-JAX reference following the PyTorch forward exactly (eval mode).
    x = video.T[None]  # (1, Cin, T)
    y = jax.lax.conv_general_dilated(
        x, conv_weight, window_strides=(1,), padding=((1, 1),),
        dimension_numbers=("NCH", "OIH", "NCH"))
    y = y + conv_bias[None, :, None]
    y = jnp.maximum(y, 0.0)
    return y[0].T  # (T, Cout)


if __name__ == "__main__":
    # Module hyper-params: in_dim=8, hidden_dim=32 (unused by module), out_dim=32, dropout=0.1
    in_dim, out_dim = 8, 32

    key = jax.random.PRNGKey(0)
    k_v1, k_v2, k_w, k_b = jax.random.split(key, 4)
    conv_weight = 0.1 * jax.random.normal(k_w, (out_dim, in_dim, 3), dtype=jnp.float32)
    conv_bias = 0.1 * jax.random.normal(k_b, (out_dim,), dtype=jnp.float32)

    # One-time parameter preprocessing (hoisted out of the forward path).
    w2d, b2d = prepare_params(conv_weight, conv_bias)

    # Case 1: module-scale shapes (single tile).
    T1 = 16
    video1 = jax.random.normal(k_v1, (T1, in_dim), dtype=jnp.float32)
    out1 = jax.block_until_ready(video_encoder(video1, w2d, b2d, out_dim))
    ref1 = reference(video1, conv_weight, conv_bias)
    assert out1.shape == (T1, out_dim)
    assert jnp.allclose(out1, ref1, atol=1e-5, rtol=1e-5), float(jnp.max(jnp.abs(out1 - ref1)))

    # Case 2: multi-tile grid with non-divisible T — exercises the cross-tile halo path.
    T2 = 300
    video2 = jax.random.normal(k_v2, (T2, in_dim), dtype=jnp.float32)
    out2 = jax.block_until_ready(video_encoder(video2, w2d, b2d, out_dim, tile_t=128))
    ref2 = reference(video2, conv_weight, conv_bias)
    assert out2.shape == (T2, out_dim)
    assert jnp.allclose(out2, ref2, atol=1e-5, rtol=1e-5), float(jnp.max(jnp.abs(out2 - ref2)))

    print("KERNEL_OK")
</pallas_src>

<mosaic_0001>
module attributes {stable_mosaic.version = 11 : i64} {
  func.func @video_encoder_kernel(%arg0: i32, %arg1: memref<16x8xf32, #tpu.memory_space<vmem>>, %arg2: memref<16x8xf32, #tpu.memory_space<vmem>>, %arg3: memref<24x128xf32, #tpu.memory_space<vmem>>, %arg4: memref<1x128xf32, #tpu.memory_space<vmem>>, %arg5: memref<16x128xf32, #tpu.memory_space<vmem>>) attributes {dimension_semantics = [#tpu.dimension_semantics<parallel>], iteration_bounds = array<i64: 1>, scalar_prefetch = 0 : i64, scratch_operands = 0 : i64, tpu.core_type = #tpu.core_type<tc>, window_params = [{transform_indices = @transform_0, window_bounds = array<i64: 16, 8>}, {transform_indices = @transform_1, window_bounds = array<i64: 16, 8>}, {pipeline_mode = #tpu.pipeline_mode<synchronous>, transform_indices = @transform_2, window_bounds = array<i64: 24, 128>}, {pipeline_mode = #tpu.pipeline_mode<synchronous>, transform_indices = @transform_3, window_bounds = array<i64: 1, 128>}, {transform_indices = @transform_4, window_bounds = array<i64: 16, 128>}]} {
    %c0 = arith.constant 0 : index
    %c0_0 = arith.constant 0 : index
    %0 = vector.load %arg1[%c0, %c0_0] : memref<16x8xf32, #tpu.memory_space<vmem>>, vector<16x8xf32>
    %c0_1 = arith.constant 0 : index
    %c0_2 = arith.constant 0 : index
    %1 = vector.load %arg2[%c0_1, %c0_2] : memref<16x8xf32, #tpu.memory_space<vmem>>, vector<2x8xf32>
    %2 = tpu.concatenate %0, %1 in 0 : vector<16x8xf32>, vector<2x8xf32> -> vector<18x8xf32>
    %3 = vector.extract_strided_slice %2 {offsets = [0, 0], sizes = [16, 8], strides = [1, 1]} : vector<18x8xf32> to vector<16x8xf32>
    %4 = vector.extract_strided_slice %2 {offsets = [1, 0], sizes = [16, 8], strides = [1, 1]} : vector<18x8xf32> to vector<16x8xf32>
    %5 = vector.extract_strided_slice %2 {offsets = [2, 0], sizes = [16, 8], strides = [1, 1]} : vector<18x8xf32> to vector<16x8xf32>
    %6 = tpu.concatenate %3, %4, %5 in 1 : vector<16x8xf32>, vector<16x8xf32>, vector<16x8xf32> -> vector<16x24xf32>
    %c0_3 = arith.constant 0 : index
    %c0_4 = arith.constant 0 : index
    %7 = vector.load %arg3[%c0_3, %c0_4] : memref<24x128xf32, #tpu.memory_space<vmem>>, vector<24x128xf32>
    %cst = arith.constant dense<0.000000e+00> : vector<16x128xf32>
    %8 = tpu.matmul %6, %7, %cst {dimension_numbers = #tpu.dot_dimension_numbers<[1], [0], [0], [1], [0, 0, 1, 1], [], []>} : vector<16x24xf32>, vector<24x128xf32>, vector<16x128xf32> -> vector<16x128xf32>
    %c0_5 = arith.constant 0 : index
    %c0_6 = arith.constant 0 : index
    %9 = vector.load %arg4[%c0_5, %c0_6] : memref<1x128xf32, #tpu.memory_space<vmem>>, vector<1x128xf32>
    %10 = vector.broadcast %9 : vector<1x128xf32> to vector<16x128xf32>
    %11 = arith.addf %8, %10 : vector<16x128xf32>
    %cst_7 = arith.constant 0.000000e+00 : f32
    %12 = vector.broadcast %cst_7 : f32 to vector<16x128xf32>
    %13 = arith.maximumf %11, %12 : vector<16x128xf32>
    %c0_8 = arith.constant 0 : index
    %c0_9 = arith.constant 0 : index
    %14 = vector.load %arg5[%c0_8, %c0_9] : memref<16x128xf32, #tpu.memory_space<vmem>>, vector<16x128xf32>
    tpu.vector_store %arg5[%c0_8, %c0_9], %13 {strides = array<i32>} : memref<16x128xf32, #tpu.memory_space<vmem>>, vector<16x128xf32>,
    return
  }
  func.func @transform_0(%arg0: i32) -> (i32, i32) {
    %c0_i32 = arith.constant 0 : i32
    %c0_i32_0 = arith.constant 0 : i32
    return %arg0, %c0_i32 : i32, i32
  }
  func.func @transform_1(%arg0: i32) -> (i32, i32) {
    %c1_i32 = arith.constant 1 : i32
    %0 = arith.addi %arg0, %c1_i32 : i32
    %c0_i32 = arith.constant 0 : i32
    %c0_i32_0 = arith.constant 0 : i32
    return %0, %c0_i32 : i32, i32
  }
  func.func @transform_2(%arg0: i32) -> (i32, i32) {
    %c0_i32 = arith.constant 0 : i32
    %c0_i32_0 = arith.constant 0 : i32
    %c0_i32_1 = arith.constant 0 : i32
    return %c0_i32, %c0_i32_0 : i32, i32
  }
  func.func @transform_3(%arg0: i32) -> (i32, i32) {
    %c0_i32 = arith.constant 0 : i32
    %c0_i32_0 = arith.constant 0 : i32
    %c0_i32_1 = arith.constant 0 : i32
    return %c0_i32, %c0_i32_0 : i32, i32
  }
  func.func @transform_4(%arg0: i32) -> (i32, i32) {
    %c0_i32 = arith.constant 0 : i32
    %c0_i32_0 = arith.constant 0 : i32
    return %arg0, %c0_i32 : i32, i32
  }
}

</mosaic_0001>

<llo_original>
// kernel: tpu_custom_call.1
$region0: #{tpu_custom_call.1}
  #allocation0 [shape = 'u32[]', space=smem, size = 0x4, offset = 0x4, fixed_abs, tag = 'smem constant byte address 0x4 - core index']
  #allocation1 [shape = 'u32[144,128]{1,0:T(1,128)}', space=vmem, size = 0x12000, scoped, tag = 'internal scratch']
  %s0 = inlined_call_operand.vmem [shape: f32[32,8], index: 0, kind: input, shape index: {}]
  %s1 = inlined_call_operand.vmem [shape: f32[32,8], index: 1, kind: input, shape index: {}]
  %s2 = inlined_call_operand.vmem [shape: f32[24,128], index: 2, kind: input, shape index: {}]
  %s3 = inlined_call_operand.vmem [shape: f32[1,128], index: 3, kind: input, shape index: {}]
  %s4 = inlined_call_operand.hbm [shape: f32[16,128], index: 4, kind: output, shape index: {}]
  %s5 = sld [smem:[#allocation0]]
  $region26: #{tpu_custom_call.1} parent=0
    _
  %s7 = ssub.s32 1, %s5
  %s8 = scalar_select 0, %s7, %s5
  $region1: #{tpu_custom_call.1} parent=0
    #allocation2 [shape = 'u8[8192]{0}', space=vmem, size = 0x2000, scoped, tag = 'output window, operand 0, single buffered']
    #allocation3 [shape = 's32[1]{0}', space=sflag, size = 0x4, scoped, tag = 'scoped memory for tpu_custom_call.1']
    %9 = vsyncpa [#allocation3], 0
    // Predicated region
    $region2: #{tpu_custom_call.1} parent=1 // pred_check
      _
    $region3: #{tpu_custom_call.1} parent=1 // pred_check_branch
      %11 = sbr.rel (0) target = $region5
    $region4: #{tpu_custom_call.1} parent=1 // pred_region
      _
    $region5: #{tpu_custom_call.1} parent=1 // pred_fallthru
      _
    // Predicated region
    $region6: #{tpu_custom_call.1} parent=1 // pred_check
      _
    $region7: #{tpu_custom_call.1} parent=1 // pred_check_branch
      %13 = sbr.rel (0) target = $region9
    $region8: #{tpu_custom_call.1} parent=1 // pred_region
      %s14 = sadd.s32 0, 1
      %s15 = smul.u32 2, %s14
      %p16 = scmp.lt.s32.totalorder %s15, 3
      %s17 = scalar_select %p16, %s15, 3
      %s18 = smul.addr %s17, 8
      %s19 = scalar_lea.vmem %s1, %s18
      %s20 = sadd.s32 0, 1
      %s21 = smul.u32 2, %s20
    $region9: #{tpu_custom_call.1} parent=1 // pred_fallthru
      _
    // Predicated region
    $region10: #{tpu_custom_call.1} parent=1 // pred_check
      _
    $region11: #{tpu_custom_call.1} parent=1 // pred_check_branch
      %23 = sbr.rel (0) target = $region13
    $region12: #{tpu_custom_call.1} parent=1 // pred_region
      _
    $region13: #{tpu_custom_call.1} parent=1 // pred_fallthru
      _
    // Predicated region
    $region14: #{tpu_custom_call.1} parent=1 // pred_check
      _
    $region15: #{tpu_custom_call.1} parent=1 // pred_check_branch
      %25 = sbr.rel (0) target = $region17
    $region16: #{tpu_custom_call.1} parent=1 // pred_region
      _
    $region17: #{tpu_custom_call.1} parent=1 // pred_fallthru
      _
    %s26 = sadd.s32 0, 1
    %s27 = smul.u32 2, %s26
    %p28 = scmp.lt.s32.totalorder %s27, 3
    %s29 = scalar_select %p28, %s27, 3
    %s30 = smul.addr %s29, 8
    %s31 = scalar_lea.vmem %s1, %s30
    %s32 = sadd.s32 0, 1
    %s33 = smul.u32 2, %s32
    %p34 = scmp.lt.s32.totalorder %s33, 3
    %s35 = scalar_select %p34, %s33, 3
    %s36 = smul.addr %s35, 8
    %s37 = scalar_lea.vmem %s1, %s36
    %s38 = sadd.s32 0, 1
    %s39 = smul.u32 2, %s38
    %v40 = vld [vmem:[%s0] sm:$0xff]
    %v41 = vld [vmem:[%s0 + $0x8] sm:$0xff]
    %v42 = vld [vmem:[%s37] sm:$0x3]
    %vm46 = vcmask 1046528
    %v47 = vrot.slane %v40, 1
    %v48 = vrot.slane %v41, 1
    %v49 = vsel %vm46, %v47, %v48
    %v50 = vrot.slane %v42, 1
    %v51 = vsel %vm46, %v48, %v50
    %52 = vrot.lane.b32.xlu0 %v49, 8
    %v53 = vpop.permute.xlu0 %52
    %54 = vrot.lane.b32.xlu0 %v51, 8
    %v55 = vpop.permute.xlu0 %54
    %vm58 = vcmask 1045504
    %v59 = vrot.slane %v40, 2
    %v60 = vrot.slane %v41, 2
    %v61 = vsel %vm58, %v59, %v60
    %v62 = vrot.slane %v42, 2
    %v63 = vsel %vm58, %v60, %v62
    %64 = vrot.lane.b32.xlu0 %v61, 16
    %v65 = vpop.permute.xlu0 %64
    %66 = vrot.lane.b32.xlu0 %v63, 16
    %v67 = vpop.permute.xlu0 %66
    %vm70 = vcmask 64512
    %v71 = vsel %vm70, %v40, %v53
    %v72 = vsel %vm70, %v41, %v55
    %vm73 = vcmask 130048
    %v74 = vsel %vm73, %v71, %v65
    %v75 = vsel %vm73, %v72, %v67
    %v76 = vld [vmem:[%s2] sm:$0xff]
    %v77 = vld [vmem:[%s2 + $0x8] sm:$0xff]
    %v78 = vld [vmem:[%s2 + $0x10] sm:$0xff]
    %v79 = vld [vmem:[%s3] sm:$0x1]
    %v81 = vlaneseq
    %v82 = vshrl.u32 %v81, 7
    %v83 = vsub.s32 0, %v82
    %v84 = vrot.slane %v79, %v83
    %vm86 = vcmask 195584
    %v88 = vsel %vm86, %v74, 0
    %v91 = vsel %vm86, %v75, 0
    %93 = vmatprep.subr.mxu0 0.0
    %94 = vmatpush1.msra.mxu0 %v76
    %95 = vmatprep.subr.mxu0 0.0
    %96 = vmatpush1.msra.mxu0 %v77
    %97 = vmatprep.subr.mxu0 0.0
    %98 = vmatpush1.msra.mxu0 %v78
    %99 = vmatprep.subr.mxu0 0.0
    %100 = vmatpush1.msra.mxu0 0.0
    %101 = vmatprep.subr.mxu0 0.0
    %102 = vmatpush1.msra.mxu0 0.0
    %103 = vmatprep.subr.mxu0 0.0
    %104 = vmatpush1.msra.mxu0 0.0
    %105 = vmatprep.subr.mxu0 0.0
    %106 = vmatpush1.msra.mxu0 0.0
    %107 = vmatprep.subr.mxu0 0.0
    %108 = vmatpush1.msra.mxu0 0.0
    %109 = vmatprep.subr.mxu0 0.0
    %110 = vmatpush1.msra.mxu0 0.0
    %111 = vmatprep.subr.mxu0 0.0
    %112 = vmatpush1.msra.mxu0 0.0
    %113 = vmatprep.subr.mxu0 0.0
    %114 = vmatpush1.msra.mxu0 0.0
    %115 = vmatprep.subr.mxu0 0.0
    %116 = vmatpush1.msra.mxu0 0.0
    %117 = vmatprep.subr.mxu0 0.0
    %118 = vmatpush1.msra.mxu0 0.0
    %119 = vmatprep.subr.mxu0 0.0
    %120 = vmatpush1.msra.mxu0 0.0
    %121 = vmatprep.subr.mxu0 0.0
    %122 = vmatpush1.msra.mxu0 0.0
    %123 = vmatprep.subr.mxu0 0.0
    %124 = vmatpush1.msra.mxu0 0.0
    %125 = vmatprep.subr.mxu0 0.0
    %126 = vmatpush1.msra.mxu0 0.0
    %127 = vmatprep.subr.mxu0 0.0
    %128 = vmatpush1.msra.mxu0 0.0
    %129 = vmatprep.subr.mxu0 0.0
    %130 = vmatpush1.msra.mxu0 0.0
    %131 = vmatprep.subr.mxu0 0.0
    %132 = vmatpush1.msra.mxu0 0.0
    %133 = vmatprep.subr.mxu0 0.0
    %134 = vmatpush1.msra.mxu0 0.0
    %135 = vmatprep.subr.mxu0 0.0
    %136 = vmatpush1.msra.mxu0 0.0
    %137 = vmatprep.subr.mxu0 0.0
    %138 = vmatpush1.msra.mxu0 0.0
    %139 = vmatprep.subr.mxu0 0.0
    %140 = vmatpush1.msra.mxu0 0.0
    %141 = vmatprep.subr.mxu0 0.0
    %142 = vmatpush1.msra.mxu0 0.0
    %143 = vmatprep.subr.mxu0 0.0
    %144 = vmatpush1.msra.mxu0 0.0
    %145 = vmatprep.subr.mxu0 0.0
    %146 = vmatpush1.msra.mxu0 0.0
    %147 = vmatprep.subr.mxu0 0.0
    %148 = vmatpush1.msra.mxu0 0.0
    %149 = vmatprep.subr.mxu0 0.0
    %150 = vmatpush1.msra.mxu0 0.0
    %151 = vmatprep.subr.mxu0 0.0
    %152 = vmatpush1.msra.mxu0 0.0
    %153 = vmatprep.subr.mxu0 0.0
    %154 = vmatpush1.msra.mxu0 0.0
    %155 = vmatprep.subr.mxu0 0.0
    %156 = vmatpush1.msra.mxu0 0.0
    %157 = vmatprep.mubr.f32.mxu0 0.0
    %158 = vmatmul.mubr.f32.gmra.mrb[0].mxu0 %v88
    %v159 = vpop.f32.mrb[0].mxu0
    %v160 = vadd.f32 %v84, %v159
    %v161 = vpop.f32.mrb[0].mxu0
    %162 = vmatprep.mubr.f32.mxu0 0.0
    %163 = vmatmul.mubr.f32.gmra.mrb[0].mxu0 %v91
    %v164 = vpop.f32.mrb[0].mxu0
    %v165 = vadd.f32 %v84, %v164
    %v166 = vpop.f32.mrb[0].mxu0
    %167 = vdwg.mxu0
    %v168 = vmax.f32 %v160, 0.0
    %v169 = vmax.f32 %v165, 0.0
    %170 = vst [vmem:[#allocation2] sm:$0xff] %v168
    %171 = vst [vmem:[#allocation2 + $0x8] sm:$0xff] %v169
    // Predicated region
    $region18: #{tpu_custom_call.1} parent=1 // pred_check
      _
    $region19: #{tpu_custom_call.1} parent=1 // pred_check_branch
      %173 = sbr.rel (0) target = $region21
    $region20: #{tpu_custom_call.1} parent=1 // pred_region
      %s175 = ssub.s32 256, 256
      %176 = vsyncadd [#allocation3], %s175
      %s177 = sshll.u32 [#allocation2], 4
      %s178 = int_to_ptr.vmem [resolvable:$true] %s177
      %183 = dma.vmem_to_hbm [thread:$0]  %s178, 256, %s4, [#allocation3], 128, 128, 8
    $region21: #{tpu_custom_call.1} parent=1 // pred_fallthru
      _
    // Predicated region
    $region22: #{tpu_custom_call.1} parent=1 // pred_check
      _
    $region23: #{tpu_custom_call.1} parent=1 // pred_check_branch
      %185 = sbr.rel (0) target = $region25
    $region24: #{tpu_custom_call.1} parent=1 // pred_region
      %186 = dma.done [#allocation3], 256
    $region25: #{tpu_custom_call.1} parent=1 // pred_fallthru
      _
    %187 = vsyncpa [#allocation3], 1

</llo_original>
